<compile_context>
chip_gen: v6e
topology: v6e:2x2x1
jax: 0.10.0
libtpu: 0.0.40
codegen_flags: <defaults>
</compile_context>

<pallas_src>
import functools

import jax
import jax.numpy as jnp
from jax import lax
from jax.experimental import pallas as pl
from jax.experimental.pallas import tpu as pltpu


def _round_up(x, m):
    return (x + m - 1) // m * m


def _conv_matmul_kernel(p_ref, w_ref, b_ref, o_ref):
    """o = relu(p @ w + b) for one (tm, K_pad) x (K_pad, Cout_pad) tile."""
    acc = jnp.dot(p_ref[...], w_ref[...], preferred_element_type=jnp.float32)
    acc = acc + b_ref[...]          # (1, Cout_pad) broadcast, done once per tile
    o_ref[...] = jnp.maximum(acc, 0.0).astype(o_ref.dtype)


def _im2col(x, kh, kw, padding, stride):
    """x: (B, Cin, H, W) -> patches (B*Hout*Wout, Cin*kh*kw), feature order (c, i, j)."""
    B, C, H, W = x.shape
    xp = jnp.pad(x, ((0, 0), (0, 0), (padding, padding), (padding, padding)))
    Hout = (H + 2 * padding - kh) // stride + 1
    Wout = (W + 2 * padding - kw) // stride + 1
    cols = []
    for i in range(kh):
        for j in range(kw):
            patch = xp[:, :, i:i + stride * Hout:stride, j:j + stride * Wout:stride]
            cols.append(patch)                  # (B, C, Hout, Wout)
    col = jnp.stack(cols, axis=2)               # (B, C, kh*kw, Hout, Wout)
    col = col.transpose(0, 3, 4, 1, 2)          # (B, Hout, Wout, C, kh*kw)
    col = col.reshape(B * Hout * Wout, C * kh * kw)
    return col, Hout, Wout


@functools.partial(jax.jit,
                   static_argnames=("kernel_size", "padding", "stride", "block_m"))
def conv_block_forward(x, weight, bias, *, kernel_size, padding=0, stride=1,
                       block_m=512):
    """ConvBlock.forward: ReLU(Conv2d(x)).  x: NCHW float32 -> NCHW float32."""
    B, Cin, H, W = x.shape
    Cout = weight.shape[0]
    kh = kw = kernel_size

    # Host-side (XLA) im2col; cast to bf16 before it is written to HBM.
    # TODO(synk): fully fusing patch extraction into the kernel (KH*KW tap-loop of
    # shifted (tm, Cin) @ (Cin, Cout) matmuls over the NHWC input) would cut HBM
    # read traffic another ~KH*KW x; needs overlapping-window DMA not expressible
    # with plain Blocked BlockSpecs.
    patches, Hout, Wout = _im2col(x, kh, kw, padding, stride)   # (M, K) f32
    M, K = patches.shape

    # Lane-dense padding: K and Cout up to multiples of 128, M up to a multiple of tm.
    K_pad = _round_up(K, 128)
    Cout_pad = _round_up(Cout, 128)
    tm = min(block_m, _round_up(M, 8))
    tm = _round_up(tm, 8)
    M_pad = _round_up(M, tm)
    grid_m = M_pad // tm

    patches_p = jnp.zeros((M_pad, K_pad), jnp.bfloat16).at[:M, :K].set(
        patches.astype(jnp.bfloat16))
    w2d = jnp.zeros((K_pad, Cout_pad), jnp.bfloat16).at[:K, :Cout].set(
        weight.reshape(Cout, Cin * kh * kw).T.astype(jnp.bfloat16))
    b2d = jnp.zeros((1, Cout_pad), jnp.float32).at[:, :Cout].set(
        bias.reshape(1, Cout).astype(jnp.float32))

    flops = 2 * M_pad * K_pad * Cout_pad
    bytes_accessed = (patches_p.size * 2 + w2d.size * 2 + b2d.size * 4
                      + M_pad * Cout_pad * 4)

    out2d = pl.pallas_call(
        _conv_matmul_kernel,
        out_shape=jax.ShapeDtypeStruct((M_pad, Cout_pad), jnp.float32),
        grid=(grid_m,),
        in_specs=[
            pl.BlockSpec((tm, K_pad), lambda i: (i, 0)),        # streamed over M
            pl.BlockSpec((K_pad, Cout_pad), lambda i: (0, 0)),  # resident weight
            pl.BlockSpec((1, Cout_pad), lambda i: (0, 0)),      # resident bias
        ],
        out_specs=pl.BlockSpec((tm, Cout_pad), lambda i: (i, 0)),
        compiler_params=pltpu.CompilerParams(
            dimension_semantics=("parallel",)),                 # v7x: shard M over 2 TCs
        cost_estimate=pl.CostEstimate(flops=flops, transcendentals=0,
                                      bytes_accessed=bytes_accessed),
    )(patches_p, w2d, b2d)

    out2d = out2d[:M, :Cout].astype(x.dtype)
    # (B*Hout*Wout, Cout) -> NCHW to match the PyTorch module's output layout.
    # (A channels-last consumer could skip this transpose entirely.)
    out = out2d.reshape(B, Hout, Wout, Cout).transpose(0, 3, 1, 2)
    return out


def _reference_conv_block(x, weight, bias, *, padding, stride):
    """Pure-JAX reference (lax conv) for correctness checking."""
    out = lax.conv_general_dilated(
        x, weight,
        window_strides=(stride, stride),
        padding=[(padding, padding), (padding, padding)],
        dimension_numbers=("NCHW", "OIHW", "NCHW"),
    )
    out = out + bias.reshape(1, -1, 1, 1)
    return jnp.maximum(out, 0.0)


if __name__ == "__main__":
    # Small, forward-consistent shapes: batch=2, in_channels=4, out_channels=8,
    # spatial=16x16, kernel=3, padding=1, stride=1  ->  M = 2*16*16 = 512.
    B, Cin, Cout, H, W = 2, 4, 8, 16, 16
    KSIZE, PAD, STRIDE = 3, 1, 1

    key = jax.random.PRNGKey(0)
    kx, kwt, kb = jax.random.split(key, 3)

    x = jax.random.normal(kx, (B, Cin, H, W), dtype=jnp.float32)
    # Deterministic parameter init (kaiming-uniform-like bounds, same shapes as nn.Conv2d).
    fan_in = Cin * KSIZE * KSIZE
    bound = 1.0 / (fan_in ** 0.5)
    weight = jax.random.uniform(kwt, (Cout, Cin, KSIZE, KSIZE),
                                minval=-bound, maxval=bound, dtype=jnp.float32)
    bias = jax.random.uniform(kb, (Cout,), minval=-bound, maxval=bound,
                              dtype=jnp.float32)

    # block_m=128 here just exercises the multi-step (grid=(4,)) pipelined path
    # on this tiny demo; for realistic M keep the default 512 (or sweep up to 1024).
    out = conv_block_forward(x, weight, bias, kernel_size=KSIZE,
                             padding=PAD, stride=STRIDE, block_m=128)
    out = jax.block_until_ready(out)

    ref = _reference_conv_block(x, weight, bias, padding=PAD, stride=STRIDE)
    assert out.shape == ref.shape == (B, Cout, H, W)
    # bf16 matmul inputs with f32 accumulation -> looser tolerance vs. f32 reference.
    assert jnp.allclose(out, ref, atol=2e-2, rtol=2e-2), (
        float(jnp.max(jnp.abs(out - ref))))

    print("KERNEL_OK")
</pallas_src>

<mosaic_0001>
module attributes {stable_mosaic.version = 11 : i64} {
  func.func @_conv_matmul_kernel(%arg0: i32, %arg1: memref<128x128xbf16, #tpu.memory_space<vmem>>, %arg2: memref<128x128xbf16, #tpu.memory_space<vmem>>, %arg3: memref<1x128xf32, #tpu.memory_space<vmem>>, %arg4: memref<128x128xf32, #tpu.memory_space<vmem>>) attributes {dimension_semantics = [#tpu.dimension_semantics<parallel>], iteration_bounds = array<i64: 4>, scalar_prefetch = 0 : i64, scratch_operands = 0 : i64, tpu.core_type = #tpu.core_type<tc>, window_params = [{transform_indices = @transform_0, window_bounds = array<i64: 128, 128>}, {pipeline_mode = #tpu.pipeline_mode<synchronous>, transform_indices = @transform_1, window_bounds = array<i64: 128, 128>}, {pipeline_mode = #tpu.pipeline_mode<synchronous>, transform_indices = @transform_2, window_bounds = array<i64: 1, 128>}, {transform_indices = @transform_3, window_bounds = array<i64: 128, 128>}]} {
    %c0 = arith.constant 0 : index
    %c0_0 = arith.constant 0 : index
    %0 = vector.load %arg1[%c0, %c0_0] : memref<128x128xbf16, #tpu.memory_space<vmem>>, vector<128x128xbf16>
    %c0_1 = arith.constant 0 : index
    %c0_2 = arith.constant 0 : index
    %1 = vector.load %arg2[%c0_1, %c0_2] : memref<128x128xbf16, #tpu.memory_space<vmem>>, vector<128x128xbf16>
    %cst = arith.constant dense<0.000000e+00> : vector<128x128xf32>
    %2 = tpu.matmul %0, %1, %cst {dimension_numbers = #tpu.dot_dimension_numbers<[1], [0], [0], [1], [0, 0, 1, 1], [], []>} : vector<128x128xbf16>, vector<128x128xbf16>, vector<128x128xf32> -> vector<128x128xf32>
    %c0_3 = arith.constant 0 : index
    %c0_4 = arith.constant 0 : index
    %3 = vector.load %arg3[%c0_3, %c0_4] : memref<1x128xf32, #tpu.memory_space<vmem>>, vector<1x128xf32>
    %4 = vector.broadcast %3 : vector<1x128xf32> to vector<128x128xf32>
    %5 = arith.addf %2, %4 : vector<128x128xf32>
    %cst_5 = arith.constant 0.000000e+00 : f32
    %6 = vector.broadcast %cst_5 : f32 to vector<128x128xf32>
    %7 = arith.maximumf %5, %6 : vector<128x128xf32>
    %c0_6 = arith.constant 0 : index
    %c0_7 = arith.constant 0 : index
    %8 = vector.load %arg4[%c0_6, %c0_7] : memref<128x128xf32, #tpu.memory_space<vmem>>, vector<128x128xf32>
    tpu.vector_store %arg4[%c0_6, %c0_7], %7 {strides = array<i32>} : memref<128x128xf32, #tpu.memory_space<vmem>>, vector<128x128xf32>,
    return
  }
  func.func @transform_0(%arg0: i32) -> (i32, i32) {
    %c0_i32 = arith.constant 0 : i32
    %c0_i32_0 = arith.constant 0 : i32
    return %arg0, %c0_i32 : i32, i32
  }
  func.func @transform_1(%arg0: i32) -> (i32, i32) {
    %c0_i32 = arith.constant 0 : i32
    %c0_i32_0 = arith.constant 0 : i32
    %c0_i32_1 = arith.constant 0 : i32
    return %c0_i32, %c0_i32_0 : i32, i32
  }
  func.func @transform_2(%arg0: i32) -> (i32, i32) {
    %c0_i32 = arith.constant 0 : i32
    %c0_i32_0 = arith.constant 0 : i32
    %c0_i32_1 = arith.constant 0 : i32
    return %c0_i32, %c0_i32_0 : i32, i32
  }
  func.func @transform_3(%arg0: i32) -> (i32, i32) {
    %c0_i32 = arith.constant 0 : i32
    %c0_i32_0 = arith.constant 0 : i32
    return %arg0, %c0_i32 : i32, i32
  }
}

</mosaic_0001>

<llo_original>
// kernel: conv_block_forward.1
$region0: #{conv_block_forward.1}
  #allocation0 [shape = 'u32[]', space=smem, size = 0x4, offset = 0x4, fixed_abs, tag = 'smem constant byte address 0x4 - core index']
  #allocation1 [shape = 'u32[144,128]{1,0:T(1,128)}', space=vmem, size = 0x12000, scoped, tag = 'internal scratch']
  %s0 = inlined_call_operand.vmem [shape: bf16[512,128], index: 0, kind: input, shape index: {}]
  %s1 = inlined_call_operand.vmem [shape: bf16[128,128], index: 1, kind: input, shape index: {}]
  %s2 = inlined_call_operand.vmem [shape: f32[1,128], index: 2, kind: input, shape index: {}]
  %s3 = inlined_call_operand.vmem [shape: f32[512,128], index: 3, kind: output, shape index: {}]
  %s4 = sld [smem:[#allocation0]]
  $region45: #{conv_block_forward.1} parent=0
    _
  %s6 = ssub.s32 1, %s4
  %s7 = scalar_select 0, %s6, %s4
  loop: start=0, step=1, limit=6
  $region2: #{conv_block_forward.1} parent=0 // loop_pre_header
    _
  $region3: #{conv_block_forward.1} parent=0 // loop_header
    %s9 = sphi 0, %s13
    %p10 = scmp.ge.s32.totalorder %s9, 6
    %s19 = sphi 0, %s21
    %s22 = sphi 0, %s19
    %s23 = sphi 0, %s22
    %s39 = sphi 0, %s23
    %s43 = sphi 0, %s43
    %s45 = sphi 0, %s43
    %s46 = sphi 0, %s45
    %s60 = sphi 0, %s46
    %s64 = sphi 0, %s64
    %s66 = sphi 0, %s64
    %s67 = sphi 0, %s66
    %s81 = sphi 0, %s67
    %s87 = sphi 0, %s89
    %s90 = sphi 0, %s87
    %s91 = sphi 0, %s90
    %s107 = sphi 0, %s91
  $region4: #{conv_block_forward.1} parent=0 // loop_header_branch
    %12 = sbr.rel (%p10) target = $region8
  $region5: #{conv_block_forward.1} parent=0 // loop_body
    %s14 = ssub.s32 %s9, 1
    %s15 = ssub.s32 %s9, 2
    %s16 = sadd.s32 %s9, 1
    %s17 = ssub.s32 %s9, %s16
    %p18 = scmp.eq.s32.totalorder %s17, 0
    %s20 = sadd.s32 %s19, 1
    %s21 = scalar_select %p18, %s19, %s20
    %p24 = pneg %p18
    %p25 = scmp.eq.s32.totalorder %s9, 3
    %p26 = por %p24, %p25
    %p27 = scmp.ne.s32.totalorder %s19, %s22
    %p28 = scmp.eq.s32.totalorder %s9, 0
    %p29 = por %p27, %p28
    %p30 = scmp.ne.s32.totalorder %s19, %s22
    %p31 = scmp.eq.s32.totalorder %s14, 3
    %p32 = por %p30, %p31
    %p33 = scmp.ne.s32.totalorder %s22, %s23
    %p34 = scmp.eq.s32.totalorder %s14, 0
    %p35 = por %p33, %p34
    %p36 = scmp.ne.s32.totalorder %s22, %s23
    %p37 = scmp.eq.s32.totalorder %s15, 3
    %p38 = por %p36, %p37
    %p40 = scmp.ne.s32.totalorder %s23, %s39
    %p41 = scmp.eq.s32.totalorder %s15, 0
    %p42 = por %p40, %p41
    %s44 = sadd.s32 %s43, 1
    %p47 = scmp.eq.s32.totalorder %s9, 3
    %p48 = scmp.ne.s32.totalorder %s43, %s45
    %p49 = scmp.eq.s32.totalorder %s9, 0
    %p50 = por %p48, %p49
    %p51 = scmp.ne.s32.totalorder %s43, %s45
    %p52 = scmp.eq.s32.totalorder %s14, 3
    %p53 = por %p51, %p52
    %p54 = scmp.ne.s32.totalorder %s45, %s46
    %p55 = scmp.eq.s32.totalorder %s14, 0
    %p56 = por %p54, %p55
    %p57 = scmp.ne.s32.totalorder %s45, %s46
    %p58 = scmp.eq.s32.totalorder %s15, 3
    %p59 = por %p57, %p58
    %p61 = scmp.ne.s32.totalorder %s46, %s60
    %p62 = scmp.eq.s32.totalorder %s15, 0
    %p63 = por %p61, %p62
    %s65 = sadd.s32 %s64, 1
    %p68 = scmp.eq.s32.totalorder %s9, 3
    %p69 = scmp.ne.s32.totalorder %s64, %s66
    %p70 = scmp.eq.s32.totalorder %s9, 0
    %p71 = por %p69, %p70
    %p72 = scmp.ne.s32.totalorder %s64, %s66
    %p73 = scmp.eq.s32.totalorder %s14, 3
    %p74 = por %p72, %p73
    %p75 = scmp.ne.s32.totalorder %s66, %s67
    %p76 = scmp.eq.s32.totalorder %s14, 0
    %p77 = por %p75, %p76
    %p78 = scmp.ne.s32.totalorder %s66, %s67
    %p79 = scmp.eq.s32.totalorder %s15, 3
    %p80 = por %p78, %p79
    %p82 = scmp.ne.s32.totalorder %s67, %s81
    %p83 = scmp.eq.s32.totalorder %s15, 0
    %p84 = por %p82, %p83
    %s85 = ssub.s32 %s9, %s16
    %p86 = scmp.eq.s32.totalorder %s85, 0
    %s88 = sadd.s32 %s87, 1
    %s89 = scalar_select %p86, %s87, %s88
    %p92 = pneg %p86
    %p93 = scmp.eq.s32.totalorder %s9, 3
    %p94 = por %p92, %p93
    %p95 = scmp.ne.s32.totalorder %s87, %s90
    %p96 = scmp.eq.s32.totalorder %s9, 0
    %p97 = por %p95, %p96
    %p98 = scmp.ne.s32.totalorder %s87, %s90
    %p99 = scmp.eq.s32.totalorder %s14, 3
    %p100 = por %p98, %p99
    %p101 = scmp.ne.s32.totalorder %s90, %s91
    %p102 = scmp.eq.s32.totalorder %s14, 0
    %p103 = por %p101, %p102
    %p104 = scmp.ne.s32.totalorder %s90, %s91
    %p105 = scmp.eq.s32.totalorder %s15, 3
    %p106 = por %p104, %p105
    %p108 = scmp.ne.s32.totalorder %s91, %s107
    %p109 = scmp.eq.s32.totalorder %s15, 0
    %p110 = por %p108, %p109
    %p111 = scmp.le.s32.totalorder 1, %s9
    %p112 = scmp.lt.s32.totalorder %s9, 5
    %p113 = pnand %p111, %p112
    %p114 = pneg %p113
    // Predicated region
    $region9: #{conv_block_forward.1} parent=5 // pred_check
      _
    $region10: #{conv_block_forward.1} parent=5 // pred_check_branch
      %116 = sbr.rel (%p113) target = $region12
    $region11: #{conv_block_forward.1} parent=5 // pred_region
      %s117 = ssub.s32 %s9, 1
      // Predicated region
      $region13: #{conv_block_forward.1} parent=11 // pred_check
        %p118 = pneg %p56
      $region14: #{conv_block_forward.1} parent=11 // pred_check_branch
        %120 = sbr.rel (%p118) target = $region16
      $region15: #{conv_block_forward.1} parent=11 // pred_region
        _
      $region16: #{conv_block_forward.1} parent=11 // pred_fallthru
        _
      // Predicated region
      $region17: #{conv_block_forward.1} parent=11 // pred_check
        %p121 = pneg %p77
      $region18: #{conv_block_forward.1} parent=11 // pred_check_branch
        %123 = sbr.rel (%p121) target = $region20
      $region19: #{conv_block_forward.1} parent=11 // pred_region
        _
      $region20: #{conv_block_forward.1} parent=11 // pred_fallthru
        _
    $region12: #{conv_block_forward.1} parent=5 // pred_fallthru
      _
    %p124 = scmp.lt.s32.totalorder %s9, 4
    // Predicated region
    $region21: #{conv_block_forward.1} parent=5 // pred_check
      %p125 = pneg %p124
    $region22: #{conv_block_forward.1} parent=5 // pred_check_branch
      %127 = sbr.rel (%p125) target = $region24
    $region23: #{conv_block_forward.1} parent=5 // pred_region
      // Predicated region
      $region25: #{conv_block_forward.1} parent=23 // pred_check
        %p128 = pneg %p29
      $region26: #{conv_block_forward.1} parent=23 // pred_check_branch
        %130 = sbr.rel (%p128) target = $region28
      $region27: #{conv_block_forward.1} parent=23 // pred_region
        %s131 = smul.u32 16, %s9
        %p132 = scmp.lt.s32.totalorder %s131, 63
        %s133 = scalar_select %p132, %s131, 63
        %s134 = smul.addr %s133, 4
        %s135 = scalar_lea.vmem %s0, %s134
        %s136 = smul.u32 16, %s9
      $region28: #{conv_block_forward.1} parent=23 // pred_fallthru
        _
    $region24: #{conv_block_forward.1} parent=5 // pred_fallthru
      _
    %p137 = scmp.le.s32.totalorder 1, %s9
    %p138 = scmp.lt.s32.totalorder %s9, 5
    %p139 = pnand %p137, %p138
    %p140 = pneg %p139
    // Predicated region
    $region29: #{conv_block_forward.1} parent=5 // pred_check
      _
    $region30: #{conv_block_forward.1} parent=5 // pred_check_branch
      %142 = sbr.rel (%p139) target = $region32
    $region31: #{conv_block_forward.1} parent=5 // pred_region
      %s143 = ssub.s32 %s9, 1
      %s144 = smul.u32 16, %s14
      %p145 = scmp.lt.s32.totalorder %s144, 63
      %s146 = scalar_select %p145, %s144, 63
      %s147 = smul.addr %s146, 4
      %s148 = scalar_lea.vmem %s0, %s147
      %p149 = pneg %p35
      %p150 = pneg %p32
      %p151 = pneg %p56
      %p152 = pneg %p53
      %p153 = pneg %p77
      %p154 = pneg %p74
      %p155 = pneg %p103
      %p156 = pneg %p100
      %s157 = smul.u32 16, %s14
      %p158 = scmp.lt.s32.totalorder %s157, 63
      %s159 = scalar_select %p158, %s157, 63
      %s160 = smul.addr %s159, 8
      %s161 = scalar_lea.vmem %s3, %s160
      %s162 = smul.u32 16, %s14
      %p163 = scmp.lt.s32.totalorder %s162, 63
      %s164 = scalar_select %p163, %s162, 63
      %s165 = smul.addr %s164, 4
      %s166 = scalar_lea.vmem %s0, %s165
      %s167 = smul.u32 16, %s14
      %s168 = smul.u32 16, %s14
      %p169 = scmp.lt.s32.totalorder %s168, 63
      %s170 = scalar_select %p169, %s168, 63
      %s171 = smul.addr %s170, 8
      %s172 = scalar_lea.vmem %s3, %s171
      %s173 = smul.u32 16, %s14
      %v175 = vld [vmem:[%s166] sm:$0xf]
      %v176 = vld [vmem:[%s166 + $0x4] sm:$0xf]
      %v177 = vld [vmem:[%s166 + $0x8] sm:$0xf]
      %v178 = vld [vmem:[%s166 + $0xc] sm:$0xf]
      %v179 = vld [vmem:[%s166 + $0x10] sm:$0xf]
      %v180 = vld [vmem:[%s166 + $0x14] sm:$0xf]
      %v181 = vld [vmem:[%s166 + $0x18] sm:$0xf]
      %v182 = vld [vmem:[%s166 + $0x1c] sm:$0xf]
      %v183 = vld [vmem:[%s166 + $0x20] sm:$0xf]
      %v184 = vld [vmem:[%s166 + $0x24] sm:$0xf]
      %v185 = vld [vmem:[%s166 + $0x28] sm:$0xf]
      %v186 = vld [vmem:[%s166 + $0x2c] sm:$0xf]
      %v187 = vld [vmem:[%s166 + $0x30] sm:$0xf]
      %v188 = vld [vmem:[%s166 + $0x34] sm:$0xf]
      %v189 = vld [vmem:[%s166 + $0x38] sm:$0xf]
      %v190 = vld [vmem:[%s166 + $0x3c] sm:$0xf]
      %v191 = vld [vmem:[%s1] sm:$0xf]
      %v192 = vld [vmem:[%s1 + $0x4] sm:$0xf]
      %v193 = vld [vmem:[%s1 + $0x8] sm:$0xf]
      %v194 = vld [vmem:[%s1 + $0xc] sm:$0xf]
      %v195 = vld [vmem:[%s1 + $0x10] sm:$0xf]
      %v196 = vld [vmem:[%s1 + $0x14] sm:$0xf]
      %v197 = vld [vmem:[%s1 + $0x18] sm:$0xf]
      %v198 = vld [vmem:[%s1 + $0x1c] sm:$0xf]
      %v199 = vld [vmem:[%s1 + $0x20] sm:$0xf]
      %v200 = vld [vmem:[%s1 + $0x24] sm:$0xf]
      %v201 = vld [vmem:[%s1 + $0x28] sm:$0xf]
      %v202 = vld [vmem:[%s1 + $0x2c] sm:$0xf]
      %v203 = vld [vmem:[%s1 + $0x30] sm:$0xf]
      %v204 = vld [vmem:[%s1 + $0x34] sm:$0xf]
      %v205 = vld [vmem:[%s1 + $0x38] sm:$0xf]
      %v206 = vld [vmem:[%s1 + $0x3c] sm:$0xf]
      %v207 = vld [vmem:[%s2] sm:$0x1]
      %v209 = vlaneseq
      %v210 = vshrl.u32 %v209, 7
      %v211 = vsub.s32 0, %v210
      %v212 = vrot.slane %v207, %v211
      %v230 = vunpack.c.l.b16 %v175
      %v231 = vunpack.c.l.b16 %v176
      %v232 = vunpack.c.l.b16 %v177
      %v233 = vunpack.c.l.b16 %v178
      %v234 = vunpack.c.l.b16 %v179
      %v235 = vunpack.c.l.b16 %v180
      %v236 = vunpack.c.l.b16 %v181
      %v237 = vunpack.c.l.b16 %v182
      %v238 = vunpack.c.l.b16 %v183
      %v239 = vunpack.c.l.b16 %v184
      %v240 = vunpack.c.l.b16 %v185
      %v241 = vunpack.c.l.b16 %v186
      %v242 = vunpack.c.l.b16 %v187
      %v243 = vunpack.c.l.b16 %v188
      %v244 = vunpack.c.l.b16 %v189
      %v245 = vunpack.c.l.b16 %v190
      %v246 = vpack.c.b16 %v231, %v230
      %v247 = vpack.c.b16 %v233, %v232
      %v248 = vpack.c.b16 %v235, %v234
      %v249 = vpack.c.b16 %v237, %v236
      %v250 = vpack.c.b16 %v239, %v238
      %v251 = vpack.c.b16 %v241, %v240
      %v252 = vpack.c.b16 %v243, %v242
      %v253 = vpack.c.b16 %v245, %v244
      %v278 = vunpack.c.l.b16 %v191
      %v279 = vunpack.c.l.b16 %v192
      %v280 = vunpack.c.l.b16 %v193
      %v281 = vunpack.c.l.b16 %v194
      %v282 = vunpack.c.l.b16 %v195
      %v283 = vunpack.c.l.b16 %v196
      %v284 = vunpack.c.l.b16 %v197
      %v285 = vunpack.c.l.b16 %v198
      %v286 = vunpack.c.l.b16 %v199
      %v287 = vunpack.c.l.b16 %v200
      %v288 = vunpack.c.l.b16 %v201
      %v289 = vunpack.c.l.b16 %v202
      %v290 = vunpack.c.l.b16 %v203
      %v291 = vunpack.c.l.b16 %v204
      %v292 = vunpack.c.l.b16 %v205
      %v293 = vunpack.c.l.b16 %v206
      %v294 = vpack.c.b16 %v279, %v278
      %v295 = vpack.c.b16 %v281, %v280
      %v296 = vpack.c.b16 %v283, %v282
      %v297 = vpack.c.b16 %v285, %v284
      %v298 = vpack.c.b16 %v287, %v286
      %v299 = vpack.c.b16 %v289, %v288
      %v300 = vpack.c.b16 %v291, %v290
      %v301 = vpack.c.b16 %v293, %v292
      %310 = vmatprep.subr.bf16.mxu0 0
      %311 = vmatpush1.bf16.msra.mxu0 %v301
      %312 = vmatprep.subr.bf16.mxu0 0
      %313 = vmatpush1.bf16.msra.mxu0 %v300
      %314 = vmatprep.subr.bf16.mxu0 0
      %315 = vmatpush1.bf16.msra.mxu0 %v299
      %316 = vmatprep.subr.bf16.mxu0 0
      %317 = vmatpush1.bf16.msra.mxu0 %v298
      %318 = vmatprep.subr.bf16.mxu0 0
      %319 = vmatpush1.bf16.msra.mxu0 %v297
      %320 = vmatprep.subr.bf16.mxu0 0
      %321 = vmatpush1.bf16.msra.mxu0 %v296
      %322 = vmatprep.subr.bf16.mxu0 0
      %323 = vmatpush1.bf16.msra.mxu0 %v295
      %324 = vmatprep.subr.bf16.mxu0 0
      %325 = vmatpush1.bf16.msra.mxu0 %v294
      %326 = vmatprep.subr.bf16.mxu0 0
      %327 = vmatpush2.bf16.msra.mxu0 0
      %328 = vmatprep.subr.bf16.mxu0 0
      %329 = vmatpush2.bf16.msra.mxu0 0
      %330 = vmatprep.subr.bf16.mxu0 0
      %331 = vmatpush2.bf16.msra.mxu0 0
      %332 = vmatprep.subr.bf16.mxu0 0
      %333 = vmatpush2.bf16.msra.mxu0 0
      %334 = vmatprep.subr.bf16.mxu0 0
      %335 = vmatpush2.bf16.msra.mxu0 0
      %336 = vmatprep.subr.bf16.mxu0 0
      %337 = vmatpush2.bf16.msra.mxu0 0
      %338 = vmatprep.subr.bf16.mxu0 0
      %339 = vmatpush2.bf16.msra.mxu0 0
      %340 = vmatprep.subr.bf16.mxu0 0
      %341 = vmatpush2.bf16.msra.mxu0 0
      %342 = vmatprep.mubr.bf16.mxu0 0
      %343 = vmatmul.mubr.bf16.gmra.mxu0 %v246
      %v344 = vpop.f32.mrf.mxu0
      %v345 = vadd.f32 %v212, %v344
      %v346 = vpop.f32.mrf.mxu0
      %v347 = vpop.f32.mrf.mxu0
      %v348 = vadd.f32 %v212, %v347
      %v349 = vpop.f32.mrf.mxu0
      %350 = vmatprep.mubr.bf16.mxu0 0
      %351 = vmatmul.mubr.bf16.gmra.mxu0 %v247
      %v352 = vpop.f32.mrf.mxu0
      %v353 = vadd.f32 %v212, %v352
      %v354 = vpop.f32.mrf.mxu0
      %v355 = vpop.f32.mrf.mxu0
      %v356 = vadd.f32 %v212, %v355
      %v357 = vpop.f32.mrf.mxu0
      %358 = vmatprep.mubr.bf16.mxu0 0
      %359 = vmatmul.mubr.bf16.gmra.mxu0 %v248
      %v360 = vpop.f32.mrf.mxu0
      %v361 = vadd.f32 %v212, %v360
      %v362 = vpop.f32.mrf.mxu0
      %v363 = vpop.f32.mrf.mxu0
      %v364 = vadd.f32 %v212, %v363
      %v365 = vpop.f32.mrf.mxu0
      %366 = vmatprep.mubr.bf16.mxu0 0
      %367 = vmatmul.mubr.bf16.gmra.mxu0 %v249
      %v368 = vpop.f32.mrf.mxu0
      %v369 = vadd.f32 %v212, %v368
      %v370 = vpop.f32.mrf.mxu0
      %v371 = vpop.f32.mrf.mxu0
      %v372 = vadd.f32 %v212, %v371
      %v373 = vpop.f32.mrf.mxu0
      %374 = vmatprep.mubr.bf16.mxu0 0
      %375 = vmatmul.mubr.bf16.gmra.mxu0 %v250
      %v376 = vpop.f32.mrf.mxu0
      %v377 = vadd.f32 %v212, %v376
      %v378 = vpop.f32.mrf.mxu0
      %v379 = vpop.f32.mrf.mxu0
      %v380 = vadd.f32 %v212, %v379
      %v381 = vpop.f32.mrf.mxu0
      %382 = vmatprep.mubr.bf16.mxu0 0
      %383 = vmatmul.mubr.bf16.gmra.mxu0 %v251
      %v384 = vpop.f32.mrf.mxu0
      %v385 = vadd.f32 %v212, %v384
      %v386 = vpop.f32.mrf.mxu0
      %v387 = vpop.f32.mrf.mxu0
      %v388 = vadd.f32 %v212, %v387
      %v389 = vpop.f32.mrf.mxu0
      %390 = vmatprep.mubr.bf16.mxu0 0
      %391 = vmatmul.mubr.bf16.gmra.mxu0 %v252
      %v392 = vpop.f32.mrf.mxu0
      %v393 = vadd.f32 %v212, %v392
      %v394 = vpop.f32.mrf.mxu0
      %v395 = vpop.f32.mrf.mxu0
      %v396 = vadd.f32 %v212, %v395
      %v397 = vpop.f32.mrf.mxu0
      %398 = vmatprep.mubr.bf16.mxu0 0
      %399 = vmatmul.mubr.bf16.gmra.mxu0 %v253
      %v400 = vpop.f32.mrf.mxu0
      %v401 = vadd.f32 %v212, %v400
      %v402 = vpop.f32.mrf.mxu0
      %v403 = vpop.f32.mrf.mxu0
      %v404 = vadd.f32 %v212, %v403
      %v405 = vpop.f32.mrf.mxu0
      %406 = vdwg.mxu0
      %v407 = vmax.f32 %v345, 0.0
      %v408 = vmax.f32 %v348, 0.0
      %v409 = vmax.f32 %v353, 0.0
      %v410 = vmax.f32 %v356, 0.0
      %v411 = vmax.f32 %v361, 0.0
      %v412 = vmax.f32 %v364, 0.0
      %v413 = vmax.f32 %v369, 0.0
      %v414 = vmax.f32 %v372, 0.0
      %v415 = vmax.f32 %v377, 0.0
      %v416 = vmax.f32 %v380, 0.0
      %v417 = vmax.f32 %v385, 0.0
      %v418 = vmax.f32 %v388, 0.0
      %v419 = vmax.f32 %v393, 0.0
      %v420 = vmax.f32 %v396, 0.0
      %v421 = vmax.f32 %v401, 0.0
      %v422 = vmax.f32 %v404, 0.0
      %423 = vst [vmem:[%s172] sm:$0xff] %v407
      %424 = vst [vmem:[%s172 + $0x8] sm:$0xff] %v408
      %425 = vst [vmem:[%s172 + $0x10] sm:$0xff] %v409
      %426 = vst [vmem:[%s172 + $0x18] sm:$0xff] %v410
      %427 = vst [vmem:[%s172 + $0x20] sm:$0xff] %v411
      %428 = vst [vmem:[%s172 + $0x28] sm:$0xff] %v412
      %429 = vst [vmem:[%s172 + $0x30] sm:$0xff] %v413
      %430 = vst [vmem:[%s172 + $0x38] sm:$0xff] %v414
      %431 = vst [vmem:[%s172 + $0x40] sm:$0xff] %v415
      %432 = vst [vmem:[%s172 + $0x48] sm:$0xff] %v416
      %433 = vst [vmem:[%s172 + $0x50] sm:$0xff] %v417
      %434 = vst [vmem:[%s172 + $0x58] sm:$0xff] %v418
      %435 = vst [vmem:[%s172 + $0x60] sm:$0xff] %v419
      %436 = vst [vmem:[%s172 + $0x68] sm:$0xff] %v420
      %437 = vst [vmem:[%s172 + $0x70] sm:$0xff] %v421
      %438 = vst [vmem:[%s172 + $0x78] sm:$0xff] %v422
      %s439 = smul.u32 16, %s14
      %p440 = scmp.lt.s32.totalorder %s439, 63
      %s441 = scalar_select %p440, %s439, 63
      %s442 = smul.addr %s441, 8
      %s443 = scalar_lea.vmem %s3, %s442
      // Predicated region
      $region33: #{conv_block_forward.1} parent=31 // pred_check
        %p444 = pneg %p100
      $region34: #{conv_block_forward.1} parent=31 // pred_check_branch
        %446 = sbr.rel (%p444) target = $region36
      $region35: #{conv_block_forward.1} parent=31 // pred_region
        %s447 = smul.u32 16, %s14
      $region36: #{conv_block_forward.1} parent=31 // pred_fallthru
        _
    $region32: #{conv_block_forward.1} parent=5 // pred_fallthru
      _
    %p448 = scmp.le.s32.totalorder 2, %s9
    // Predicated region
    $region37: #{conv_block_forward.1} parent=5 // pred_check
      %p449 = pneg %p448
    $region38: #{conv_block_forward.1} parent=5 // pred_check_branch
      %451 = sbr.rel (%p449) target = $region40
    $region39: #{conv_block_forward.1} parent=5 // pred_region
      %s452 = ssub.s32 %s9, 2
      // Predicated region
      $region41: #{conv_block_forward.1} parent=39 // pred_check
        %p453 = pneg %p106
      $region42: #{conv_block_forward.1} parent=39 // pred_check_branch
        %455 = sbr.rel (%p453) target = $region44
      $region43: #{conv_block_forward.1} parent=39 // pred_region
        %s456 = smul.u32 16, %s15
        %p457 = scmp.lt.s32.totalorder %s456, 63
        %s458 = scalar_select %p457, %s456, 63
        %s459 = smul.addr %s458, 8
        %s460 = scalar_lea.vmem %s3, %s459
      $region44: #{conv_block_forward.1} parent=39 // pred_fallthru
        _
    $region40: #{conv_block_forward.1} parent=5 // pred_fallthru
      _
  $region6: #{conv_block_forward.1} parent=0 // loop_footer
    %s13 = sadd.s32 1, %s9
  $region7: #{conv_block_forward.1} parent=0 // loop_footer_branch
    %8 = sbr.rel target = $region3
  $region8: #{conv_block_forward.1} parent=0 // loop_exit
    _

</llo_original>
